<compile_context>
chip_gen: v5e
topology: v5e:2x2
jax: 0.10.0
libtpu: 0.0.40
codegen_flags: <defaults>
</compile_context>

<pallas_src>
import functools
import math

import jax
import jax.numpy as jnp
import numpy as np
from jax.experimental import pallas as pl
from jax.experimental.pallas import tpu as pltpu  # noqa: F401  (TPU backend / memory spaces)

# ---------------------------------------------------------------------------
# Small synthetic config (img_size=64 / token_length=64 branch of X_BERT_VQVAE:
# z_img=8 -> HW=64, z_txt=8, h_dim=32).
# ---------------------------------------------------------------------------
B = 2                # batch
CB_DIM = 32          # args.cb_dim  (codebook / BERT hidden dim)
Z_IMG = 8            # latent spatial side -> h = w = 8
HW = Z_IMG * Z_IMG   # 64 image tokens
Z_TXT = 8            # text latent length
H_DIM = 32           # hidden size of Layer_txt MLP
NUM_CODEBOOK = 64    # args.num_codebook
T_TOTAL = HW + Z_TXT # 72 tokens after concat
BETA = 0.25          # args.beta


# ---------------------------------------------------------------------------
# Fused kernel: VQ quantization + both projection heads, single invocation,
# no grid, everything lane-dense.
#   x_ref    : (B, D, TPAD)  channel-major concat of image+text latents, zero-padded
#   cb_ref   : (K, D)        codebook
#   cbt_ref  : (D, K)        codebook transposed (one-hot gather matmul)
#   nhe2_ref : (K, 1)        -0.5 * ||e_k||^2 (precomputed)
#   wbig_ref : (TPAD, h_dim+HW)  [w1^T | w_img^T], zero rows for padded tokens
#   bbig_ref : (1, h_dim+HW)     [b1 | b_img]
#   w2_ref   : (h_dim, z_txt), b2_ref : (1, z_txt)
# Outputs (all full-lane-tile stores):
#   y_ref    : (B*D, YW)     [Layer_img | Layer_txt | SSE in first pad lane | 0]
#   idx_ref  : (B, TPAD)     min-encoding indices (int32)
#   zq_ref   : (B*D, TPAD)   quantized latents, padded lanes zeroed
# ---------------------------------------------------------------------------
def fused_vq_heads_kernel(x_ref, cb_ref, cbt_ref, nhe2_ref, wbig_ref, bbig_ref,
                          w2_ref, b2_ref, y_ref, idx_ref, zq_ref, *, t_valid):
    n_b, d_dim, tpad = x_ref.shape
    k_cb = cb_ref.shape[0]
    h_dim = w2_ref.shape[0]
    z_txt = w2_ref.shape[1]
    hw_out = wbig_ref.shape[1] - h_dim
    y_w = y_ref.shape[1]
    bd = n_b * d_dim
    ntok = n_b * tpad

    # ---- single fused VQ pass over all B*TPAD tokens ----------------------
    # lane-concat the batches: each (D, TPAD) block is 128-lane aligned.
    x_slab = jnp.concatenate([x_ref[b] for b in range(n_b)], axis=1)        # (D, B*TPAD)

    # argmin_k ||z - e_k||^2 == argmax_k (z.e_k - 0.5||e_k||^2); per-token ||z||^2
    # is constant in k and the factor 2 is folded into the precomputed norm term.
    score = jnp.dot(cb_ref[...], x_slab,
                    preferred_element_type=jnp.float32) + nhe2_ref[...]     # (K, B*TPAD)
    smax = jnp.max(score, axis=0, keepdims=True)                            # (1, B*TPAD)
    row = jax.lax.broadcasted_iota(jnp.int32, (k_cb, ntok), 0)
    # first index achieving the max score (== torch.argmin of the full distance)
    idx_slab = jnp.min(jnp.where(score == smax, row, k_cb),
                       axis=0, keepdims=True)                               # (1, B*TPAD)
    onehot = (row == idx_slab).astype(jnp.float32)                          # (K, B*TPAD)
    q_slab = jnp.dot(cbt_ref[...], onehot,
                     preferred_element_type=jnp.float32)                    # (D, B*TPAD)

    # ---- reorganize into (B*D, TPAD) slabs (128-lane-aligned slices) ------
    q2 = jnp.concatenate([q_slab[:, b * tpad:(b + 1) * tpad]
                          for b in range(n_b)], axis=0)                     # (BD, TPAD)
    x2 = jnp.concatenate([x_ref[b] for b in range(n_b)], axis=0)            # (BD, TPAD)
    valid = jax.lax.broadcasted_iota(jnp.int32, (bd, tpad), 1) < t_valid
    q2 = jnp.where(valid, q2, 0.0)          # zero padded token lanes (exact SSE / heads)

    zq_ref[...] = q2                                                         # one full-tile store
    idx_ref[...] = jnp.concatenate([idx_slab[:, b * tpad:(b + 1) * tpad]
                                    for b in range(n_b)], axis=0)            # one (B,TPAD) store

    # SSE over valid tokens only (padded lanes are zero in both q2 and x2)
    diff = q2 - x2
    sse = jnp.sum(diff * diff, keepdims=True)                                # (1, 1)

    # ---- fused projection heads on the (B*D, TPAD) slab --------------------
    # one shared-LHS matmul for [Layer_txt.fc1 | Layer_img]; ReLU only h_dim cols.
    yh = jnp.dot(q2, wbig_ref[...],
                 preferred_element_type=jnp.float32) + bbig_ref[...]         # (BD, h_dim+HW)
    h1 = jnp.maximum(yh[:, :h_dim], 0.0)                                     # (BD, h_dim)
    y_img = yh[:, h_dim:]                                                    # (BD, HW)
    y_txt = jnp.dot(h1, w2_ref[...],
                    preferred_element_type=jnp.float32) + b2_ref[...]        # (BD, z_txt)

    # single full-width lane-dense store: [y_img | y_txt | sse @ pad lane 0 | 0]
    pad_w = y_w - hw_out - z_txt
    origin = ((jax.lax.broadcasted_iota(jnp.int32, (bd, pad_w), 0) == 0)
              & (jax.lax.broadcasted_iota(jnp.int32, (bd, pad_w), 1) == 0))
    pad_block = jnp.where(origin, jnp.broadcast_to(sse, (bd, pad_w)), 0.0)
    y_ref[...] = jnp.concatenate([y_img, y_txt, pad_block], axis=1)


# ---------------------------------------------------------------------------
# One-time parameter preparation (hoisted out of the per-call forward).
# ---------------------------------------------------------------------------
def prepare_kernel_params(params):
    cb = params["codebook"]                      # (K, D)
    w_img, b_img = params["w_img"], params["b_img"]   # (HW, T), (1, HW)
    w1, b1 = params["w1"], params["b1"]               # (h_dim, T), (1, h_dim)
    w2, b2 = params["w2"], params["b2"]               # (z_txt, h_dim), (1, z_txt)
    T = w_img.shape[1]
    TPAD = pl.cdiv(T, 128) * 128

    wbig = jnp.concatenate([w1.T, w_img.T], axis=1)            # (T, h_dim+HW)
    wbig = jnp.pad(wbig, ((0, TPAD - T), (0, 0)))              # zero rows for padded tokens
    bbig = jnp.concatenate([b1, b_img], axis=1)                # (1, h_dim+HW)

    return {
        "cb": cb,
        "cbt": cb.T,
        "neg_half_e2": -0.5 * jnp.sum(cb * cb, axis=1, keepdims=True),   # (K, 1)
        "wbig": wbig,
        "bbig": bbig,
        "w2t": w2.T,                                            # (h_dim, z_txt)
        "b2": b2,
    }


# ---------------------------------------------------------------------------
# X_BERT_VQVAE forward (parts expressible without the undefined sub-modules).
# ---------------------------------------------------------------------------
def x_bert_vqvae_forward(logits_i, logits_t, kparams):
    # TODO(synk): Img_2D_CNN / Txt_1D_CNN encoders are external undefined modules;
    #             this forward consumes their outputs (logits_i, logits_t) directly.
    Bsz, D, H, W = logits_i.shape
    T_txt = logits_t.shape[2]
    HW_ = H * W
    T = HW_ + T_txt
    TPAD = kparams["wbig"].shape[0]
    h_dim = kparams["w2t"].shape[0]
    ZT = kparams["w2t"].shape[1]
    HW_out = kparams["bbig"].shape[1] - h_dim
    YW = pl.cdiv(HW_out + ZT + 1, 128) * 128      # lane-dense y width (>=1 pad lane for SSE)
    assert T <= TPAD

    # 'b d h w -> b d (h w)' is a free reshape; token concat is done once in the
    # channel-major layout and zero-padded to the lane-dense token width.
    x_bdt = jnp.concatenate([logits_i.reshape(Bsz, D, HW_), logits_t], axis=2)   # (B, D, T)
    x_pad = jnp.pad(x_bdt, ((0, 0), (0, 0), (0, TPAD - T)))                      # (B, D, TPAD)

    # get_extended_attn_mask: all-ones mask -> (1 - 1) * -10000 == all-zero additive mask.
    # TODO(synk): BertModel.encoder is an external undefined module; identity pass-through.

    kernel = functools.partial(fused_vq_heads_kernel, t_valid=T)
    y_all, idx_pad, zq_pad = pl.pallas_call(
        kernel,
        out_shape=(
            jax.ShapeDtypeStruct((Bsz * D, YW), jnp.float32),
            jax.ShapeDtypeStruct((Bsz, TPAD), jnp.int32),
            jax.ShapeDtypeStruct((Bsz * D, TPAD), jnp.float32),
        ),
    )(x_pad, kparams["cb"], kparams["cbt"], kparams["neg_half_e2"],
      kparams["wbig"], kparams["bbig"], kparams["w2t"], kparams["b2"])

    sse = y_all[0, HW_out + ZT]                   # SSE folded into the first pad lane of y
    mse = sse / (Bsz * T * D)
    loss_vq = mse
    loss_commit = mse            # identical forward value (detach only changes gradients)

    b_min_idx = idx_pad[:, :T]                                           # (B, T)
    # z_q_i: Layer_img output is already (B, D, HW) row-major -> pure reshape.
    z_q_i = y_all[:, :HW_out].reshape(Bsz, D, H, W)
    # z_q_t: (B, z_txt, D), as fed to the text decoder in the reference module.
    z_q_t = jnp.transpose(y_all[:, HW_out:HW_out + ZT].reshape(Bsz, D, ZT), (0, 2, 1))
    # straight-through estimator: z + (z_q - z).detach() == z_q numerically forward.
    z_q = jnp.transpose(zq_pad[:, :T].reshape(Bsz, D, T), (0, 2, 1))     # (B, T, D)

    # TODO(synk): recon_i / recon_t, their MSE / CE / L1 / L2 losses and denormalize()
    #             require the undefined Img_2D_CNN / Txt_1D_CNN decoders + vocab.
    total_loss_partial = loss_vq + BETA * loss_commit

    losses = {
        "embedding_loss": loss_vq,
        "commit_loss": loss_commit,
        "commit_loss_beta": loss_commit * BETA,
        "z_idx_share": b_min_idx,
        "total_loss_partial": total_loss_partial,
    }
    recons = {"z_q_i": z_q_i, "z_q_t": z_q_t, "z_q": z_q}
    return losses, recons


# ---------------------------------------------------------------------------
# Pure-JAX reference pieces for correctness checking.
# ---------------------------------------------------------------------------
def _reference_distance(logits_i, logits_t, params):
    Bsz, D, H, W = logits_i.shape
    rearr_i = jnp.transpose(logits_i.reshape(Bsz, D, H * W), (0, 2, 1))
    rearr_t = jnp.transpose(logits_t, (0, 2, 1))
    z = jnp.concatenate([rearr_i, rearr_t], axis=1).reshape(-1, D)
    cb = params["codebook"]
    d = (jnp.sum(z * z, 1, keepdims=True) + jnp.sum(cb * cb, 1)[None, :]
         - 2.0 * z @ cb.T)
    return z, d


def _reference_heads(z_q_flat, Bsz, T, params):
    D = z_q_flat.shape[1]
    zq_bdt = jnp.transpose(z_q_flat.reshape(Bsz, T, D), (0, 2, 1))
    yi = jnp.einsum("bdt,ot->bdo", zq_bdt, params["w_img"]) + params["b_img"][0]
    h1 = jnp.maximum(
        jnp.einsum("bdt,ot->bdo", zq_bdt, params["w1"]) + params["b1"][0], 0.0)
    yt = jnp.einsum("bdh,oh->bdo", h1, params["w2"]) + params["b2"][0]
    return yi, yt


def _linear_init(kw, kb, fan_out, fan_in):
    bound = 1.0 / math.sqrt(fan_in)
    w = jax.random.uniform(kw, (fan_out, fan_in), jnp.float32, -bound, bound)
    b = jax.random.uniform(kb, (1, fan_out), jnp.float32, -bound, bound)
    return w, b


if __name__ == "__main__":
    key = jax.random.PRNGKey(0)
    (k_cb, k_wi, k_bi, k_w1, k_b1, k_w2, k_b2, k_li, k_lt) = jax.random.split(key, 9)

    params = {
        "codebook": jax.random.uniform(
            k_cb, (NUM_CODEBOOK, CB_DIM), jnp.float32,
            -1.0 / NUM_CODEBOOK, 1.0 / NUM_CODEBOOK),
    }
    params["w_img"], params["b_img"] = _linear_init(k_wi, k_bi, HW, T_TOTAL)
    params["w1"], params["b1"] = _linear_init(k_w1, k_b1, H_DIM, T_TOTAL)
    params["w2"], params["b2"] = _linear_init(k_w2, k_b2, Z_TXT, H_DIM)

    # TODO(synk): stand-ins for the undefined Img_2D_CNN / Txt_1D_CNN encoder outputs.
    logits_i = jax.random.normal(k_li, (B, CB_DIM, Z_IMG, Z_IMG), jnp.float32)
    logits_t = jax.random.normal(k_lt, (B, CB_DIM, Z_TXT), jnp.float32)

    # One-time kernel-param preparation (transposes / concat / padding) outside jit.
    kparams = jax.tree_util.tree_map(jnp.asarray, prepare_kernel_params(params))

    fwd = jax.jit(x_bert_vqvae_forward)
    losses, recons = fwd(logits_i, logits_t, kparams)
    jax.block_until_ready((losses, recons))

    # -------------------- correctness checks --------------------
    z_ref, d_ref = _reference_distance(logits_i, logits_t, params)
    d_np = np.asarray(d_ref)
    z_np = np.asarray(z_ref)
    cb_np = np.asarray(params["codebook"])
    N = B * T_TOTAL

    idx_k = np.asarray(losses["z_idx_share"]).reshape(-1)
    assert idx_k.shape == (N,)
    assert idx_k.min() >= 0 and idx_k.max() < NUM_CODEBOOK
    # kernel index must (numerically) minimise the true VQ distance per token
    picked_d = d_np[np.arange(N), idx_k]
    assert np.all(picked_d <= d_np.min(axis=1) + 1e-4)
    # and agree with the f32 reference argmin up to floating-point ties
    assert np.mean(idx_k == np.asarray(jnp.argmin(d_ref, axis=1))) > 0.95

    # quantized latents == gathered codebook rows (straight-through forward value)
    zq_k = cb_np[idx_k]                                              # (N, D)
    np.testing.assert_allclose(np.asarray(recons["z_q"]).reshape(N, CB_DIM),
                               zq_k, rtol=1e-3, atol=1e-5)

    # VQ / commitment loss
    mse_k = float(np.mean((zq_k - z_np) ** 2))
    np.testing.assert_allclose(float(losses["embedding_loss"]), mse_k,
                               rtol=1e-3, atol=1e-5)
    np.testing.assert_allclose(float(losses["commit_loss_beta"]), BETA * mse_k,
                               rtol=1e-3, atol=1e-5)

    # projection heads, evaluated on the kernel-selected codes
    yi_ref, yt_ref = _reference_heads(jnp.asarray(zq_k), B, T_TOTAL, params)
    np.testing.assert_allclose(np.asarray(recons["z_q_i"]).reshape(B, CB_DIM, HW),
                               np.asarray(yi_ref), rtol=1e-3, atol=1e-3)
    np.testing.assert_allclose(np.asarray(recons["z_q_t"]),
                               np.asarray(jnp.transpose(yt_ref, (0, 2, 1))),
                               rtol=1e-3, atol=1e-3)

    print("KERNEL_OK")
</pallas_src>

<mosaic_0001>
module attributes {stable_mosaic.version = 11 : i64} {
  func.func @fused_vq_heads_kernel(%arg0: memref<2x32x128xf32, #tpu.memory_space<vmem>>, %arg1: memref<64x32xf32, #tpu.memory_space<vmem>>, %arg2: memref<32x64xf32, #tpu.memory_space<vmem>>, %arg3: memref<64x1xf32, #tpu.memory_space<vmem>>, %arg4: memref<128x96xf32, #tpu.memory_space<vmem>>, %arg5: memref<1x96xf32, #tpu.memory_space<vmem>>, %arg6: memref<32x8xf32, #tpu.memory_space<vmem>>, %arg7: memref<1x8xf32, #tpu.memory_space<vmem>>, %arg8: memref<64x128xf32, #tpu.memory_space<vmem>>, %arg9: memref<2x128xi32, #tpu.memory_space<vmem>>, %arg10: memref<64x128xf32, #tpu.memory_space<vmem>>) attributes {dimension_semantics = [], scalar_prefetch = 0 : i64, scratch_operands = 0 : i64, tpu.core_type = #tpu.core_type<tc>} {
    %c0 = arith.constant 0 : index
    %c0_0 = arith.constant 0 : index
    %c0_1 = arith.constant 0 : index
    %0 = vector.load %arg0[%c0, %c0_0, %c0_1] : memref<2x32x128xf32, #tpu.memory_space<vmem>>, vector<1x32x128xf32>
    %1 = vector.shape_cast %0 : vector<1x32x128xf32> to vector<32x128xf32>
    %c1 = arith.constant 1 : index
    %c0_2 = arith.constant 0 : index
    %c0_3 = arith.constant 0 : index
    %2 = vector.load %arg0[%c1, %c0_2, %c0_3] : memref<2x32x128xf32, #tpu.memory_space<vmem>>, vector<1x32x128xf32>
    %3 = vector.shape_cast %2 : vector<1x32x128xf32> to vector<32x128xf32>
    %4 = tpu.concatenate %1, %3 in 1 : vector<32x128xf32>, vector<32x128xf32> -> vector<32x256xf32>
    %c0_4 = arith.constant 0 : index
    %c0_5 = arith.constant 0 : index
    %5 = vector.load %arg1[%c0_4, %c0_5] : memref<64x32xf32, #tpu.memory_space<vmem>>, vector<64x32xf32>
    %cst = arith.constant dense<0.000000e+00> : vector<64x256xf32>
    %6 = tpu.matmul %5, %4, %cst {dimension_numbers = #tpu.dot_dimension_numbers<[1], [0], [0], [1], [0, 0, 1, 1], [], []>} : vector<64x32xf32>, vector<32x256xf32>, vector<64x256xf32> -> vector<64x256xf32>
    %c0_6 = arith.constant 0 : index
    %c0_7 = arith.constant 0 : index
    %7 = vector.load %arg3[%c0_6, %c0_7] : memref<64x1xf32, #tpu.memory_space<vmem>>, vector<64x1xf32>
    %8 = vector.broadcast %7 : vector<64x1xf32> to vector<64x256xf32>
    %9 = arith.addf %6, %8 : vector<64x256xf32>
    %cst_8 = arith.constant dense<0xFF800000> : vector<256xf32>
    %10 = vector.multi_reduction <maximumf>, %9, %cst_8 [0] : vector<64x256xf32> to vector<256xf32>
    %11 = vector.shape_cast %10 : vector<256xf32> to vector<1x256xf32>
    %12 = tpu.iota {dimensions = array<i32: 0>} : vector<64x256xi32>
    %13 = vector.broadcast %11 : vector<1x256xf32> to vector<64x256xf32>
    %14 = arith.cmpf oeq, %9, %13 : vector<64x256xf32>
    %c64_i32 = arith.constant 64 : i32
    %15 = vector.broadcast %c64_i32 : i32 to vector<64x256xi32>
    %16 = arith.select %14, %12, %15 : vector<64x256xi1>, vector<64x256xi32>
    %cst_9 = arith.constant dense<2147483647> : vector<256xi32>
    %17 = vector.multi_reduction <minsi>, %16, %cst_9 [0] : vector<64x256xi32> to vector<256xi32>
    %18 = vector.shape_cast %17 : vector<256xi32> to vector<1x256xi32>
    %19 = vector.broadcast %18 : vector<1x256xi32> to vector<64x256xi32>
    %20 = arith.cmpi eq, %12, %19 : vector<64x256xi32>
    %21 = arith.extui %20 : vector<64x256xi1> to vector<64x256xi32>
    %22 = arith.sitofp %21 : vector<64x256xi32> to vector<64x256xf32>
    %c0_10 = arith.constant 0 : index
    %c0_11 = arith.constant 0 : index
    %23 = vector.load %arg2[%c0_10, %c0_11] : memref<32x64xf32, #tpu.memory_space<vmem>>, vector<32x64xf32>
    %cst_12 = arith.constant dense<0.000000e+00> : vector<32x256xf32>
    %24 = tpu.matmul %23, %22, %cst_12 {dimension_numbers = #tpu.dot_dimension_numbers<[1], [0], [0], [1], [0, 0, 1, 1], [], []>} : vector<32x64xf32>, vector<64x256xf32>, vector<32x256xf32> -> vector<32x256xf32>
    %25 = vector.extract_strided_slice %24 {offsets = [0, 0], sizes = [32, 128], strides = [1, 1]} : vector<32x256xf32> to vector<32x128xf32>
    %26 = vector.extract_strided_slice %24 {offsets = [0, 128], sizes = [32, 128], strides = [1, 1]} : vector<32x256xf32> to vector<32x128xf32>
    %27 = tpu.concatenate %25, %26 in 0 : vector<32x128xf32>, vector<32x128xf32> -> vector<64x128xf32>
    %c0_13 = arith.constant 0 : index
    %c0_14 = arith.constant 0 : index
    %c0_15 = arith.constant 0 : index
    %28 = vector.load %arg0[%c0_13, %c0_14, %c0_15] : memref<2x32x128xf32, #tpu.memory_space<vmem>>, vector<1x32x128xf32>
    %29 = vector.shape_cast %28 : vector<1x32x128xf32> to vector<32x128xf32>
    %c1_16 = arith.constant 1 : index
    %c0_17 = arith.constant 0 : index
    %c0_18 = arith.constant 0 : index
    %30 = vector.load %arg0[%c1_16, %c0_17, %c0_18] : memref<2x32x128xf32, #tpu.memory_space<vmem>>, vector<1x32x128xf32>
    %31 = vector.shape_cast %30 : vector<1x32x128xf32> to vector<32x128xf32>
    %32 = tpu.concatenate %29, %31 in 0 : vector<32x128xf32>, vector<32x128xf32> -> vector<64x128xf32>
    %33 = tpu.iota {dimensions = array<i32: 1>} : vector<64x128xi32>
    %c72_i32 = arith.constant 72 : i32
    %34 = vector.broadcast %c72_i32 : i32 to vector<64x128xi32>
    %35 = arith.cmpi slt, %33, %34 : vector<64x128xi32>
    %cst_19 = arith.constant 0.000000e+00 : f32
    %36 = vector.broadcast %cst_19 : f32 to vector<64x128xf32>
    %37 = arith.select %35, %27, %36 : vector<64x128xi1>, vector<64x128xf32>
    %c0_20 = arith.constant 0 : index
    %c0_21 = arith.constant 0 : index
    %38 = vector.load %arg10[%c0_20, %c0_21] : memref<64x128xf32, #tpu.memory_space<vmem>>, vector<64x128xf32>
    tpu.vector_store %arg10[%c0_20, %c0_21], %37 {strides = array<i32>} : memref<64x128xf32, #tpu.memory_space<vmem>>, vector<64x128xf32>,
    %39 = vector.extract_strided_slice %18 {offsets = [0, 0], sizes = [1, 128], strides = [1, 1]} : vector<1x256xi32> to vector<1x128xi32>
    %40 = vector.extract_strided_slice %18 {offsets = [0, 128], sizes = [1, 128], strides = [1, 1]} : vector<1x256xi32> to vector<1x128xi32>
    %41 = tpu.concatenate %39, %40 in 0 : vector<1x128xi32>, vector<1x128xi32> -> vector<2x128xi32>
    %c0_22 = arith.constant 0 : index
    %c0_23 = arith.constant 0 : index
    %42 = vector.load %arg9[%c0_22, %c0_23] : memref<2x128xi32, #tpu.memory_space<vmem>>, vector<2x128xi32>
    tpu.vector_store %arg9[%c0_22, %c0_23], %41 {strides = array<i32>} : memref<2x128xi32, #tpu.memory_space<vmem>>, vector<2x128xi32>,
    %43 = arith.subf %37, %32 : vector<64x128xf32>
    %44 = arith.mulf %43, %43 : vector<64x128xf32>
    %45 = vector.shape_cast %44 : vector<64x128xf32> to vector<1x64x128xf32>
    %cst_24 = arith.constant dense<0.000000e+00> : vector<1xf32>
    %46 = vector.multi_reduction <add>, %45, %cst_24 [1, 2] : vector<1x64x128xf32> to vector<1xf32>
    %47 = vector.shape_cast %46 : vector<1xf32> to vector<1x1x1xf32>
    %48 = vector.extract %47[0, 0, 0] : f32 from vector<1x1x1xf32>
    %49 = vector.broadcast %48 : f32 to vector<1x1xf32>
    %c0_25 = arith.constant 0 : index
    %c0_26 = arith.constant 0 : index
    %50 = vector.load %arg4[%c0_25, %c0_26] : memref<128x96xf32, #tpu.memory_space<vmem>>, vector<128x96xf32>
    %cst_27 = arith.constant dense<0.000000e+00> : vector<64x96xf32>
    %51 = tpu.matmul %37, %50, %cst_27 {dimension_numbers = #tpu.dot_dimension_numbers<[1], [0], [0], [1], [0, 0, 1, 1], [], []>} : vector<64x128xf32>, vector<128x96xf32>, vector<64x96xf32> -> vector<64x96xf32>
    %c0_28 = arith.constant 0 : index
    %c0_29 = arith.constant 0 : index
    %52 = vector.load %arg5[%c0_28, %c0_29] : memref<1x96xf32, #tpu.memory_space<vmem>>, vector<1x96xf32>
    %53 = vector.broadcast %52 : vector<1x96xf32> to vector<64x96xf32>
    %54 = arith.addf %51, %53 : vector<64x96xf32>
    %55 = vector.extract_strided_slice %54 {offsets = [0, 0], sizes = [64, 32], strides = [1, 1]} : vector<64x96xf32> to vector<64x32xf32>
    %cst_30 = arith.constant 0.000000e+00 : f32
    %56 = vector.broadcast %cst_30 : f32 to vector<64x32xf32>
    %57 = arith.maximumf %55, %56 : vector<64x32xf32>
    %58 = vector.extract_strided_slice %54 {offsets = [0, 32], sizes = [64, 64], strides = [1, 1]} : vector<64x96xf32> to vector<64x64xf32>
    %c0_31 = arith.constant 0 : index
    %c0_32 = arith.constant 0 : index
    %59 = vector.load %arg6[%c0_31, %c0_32] : memref<32x8xf32, #tpu.memory_space<vmem>>, vector<32x8xf32>
    %cst_33 = arith.constant dense<0.000000e+00> : vector<64x8xf32>
    %60 = tpu.matmul %57, %59, %cst_33 {dimension_numbers = #tpu.dot_dimension_numbers<[1], [0], [0], [1], [0, 0, 1, 1], [], []>} : vector<64x32xf32>, vector<32x8xf32>, vector<64x8xf32> -> vector<64x8xf32>
    %c0_34 = arith.constant 0 : index
    %c0_35 = arith.constant 0 : index
    %61 = vector.load %arg7[%c0_34, %c0_35] : memref<1x8xf32, #tpu.memory_space<vmem>>, vector<1x8xf32>
    %62 = vector.broadcast %61 : vector<1x8xf32> to vector<64x8xf32>
    %63 = arith.addf %60, %62 : vector<64x8xf32>
    %64 = tpu.iota {dimensions = array<i32: 0>} : vector<64x56xi32>
    %c0_i32 = arith.constant 0 : i32
    %65 = vector.broadcast %c0_i32 : i32 to vector<64x56xi32>
    %66 = arith.cmpi eq, %64, %65 : vector<64x56xi32>
    %67 = tpu.iota {dimensions = array<i32: 1>} : vector<64x56xi32>
    %c0_i32_36 = arith.constant 0 : i32
    %68 = vector.broadcast %c0_i32_36 : i32 to vector<64x56xi32>
    %69 = arith.cmpi eq, %67, %68 : vector<64x56xi32>
    %70 = arith.andi %66, %69 : vector<64x56xi1>
    %71 = vector.shape_cast %49 : vector<1x1xf32> to vector<1x1xf32>
    %72 = vector.broadcast %71 : vector<1x1xf32> to vector<64x56xf32>
    %cst_37 = arith.constant 0.000000e+00 : f32
    %73 = vector.broadcast %cst_37 : f32 to vector<64x56xf32>
    %74 = arith.select %70, %72, %73 : vector<64x56xi1>, vector<64x56xf32>
    %75 = tpu.concatenate %58, %63, %74 in 1 : vector<64x64xf32>, vector<64x8xf32>, vector<64x56xf32> -> vector<64x128xf32>
    %c0_38 = arith.constant 0 : index
    %c0_39 = arith.constant 0 : index
    %76 = vector.load %arg8[%c0_38, %c0_39] : memref<64x128xf32, #tpu.memory_space<vmem>>, vector<64x128xf32>
    tpu.vector_store %arg8[%c0_38, %c0_39], %75 {strides = array<i32>} : memref<64x128xf32, #tpu.memory_space<vmem>>, vector<64x128xf32>,
    return
  }
}

</mosaic_0001>

<llo_original>
// kernel: x_bert_vqvae_forward.1
$region0: #{x_bert_vqvae_forward.1}
  #allocation0 [shape = 'u32[]', space=smem, size = 0x4, offset = 0x4, fixed_abs, tag = 'smem constant byte address 0x4 - core index']
  #allocation1 [shape = 'u32[72,128]{1,0:T(1,128)}', space=vmem, size = 0x9000, scoped, tag = 'internal scratch']
  %s0 = inlined_call_operand.vmem [shape: f32[2,32,128], index: 0, kind: input, shape index: {}]
  %s1 = inlined_call_operand.vmem [shape: f32[64,32], index: 1, kind: input, shape index: {}]
  %s2 = inlined_call_operand.vmem [shape: f32[32,64], index: 2, kind: input, shape index: {}]
  %s3 = inlined_call_operand.vmem [shape: f32[64,1], index: 3, kind: input, shape index: {}]
  %s4 = inlined_call_operand.vmem [shape: f32[128,96], index: 4, kind: input, shape index: {}]
  %s5 = inlined_call_operand.vmem [shape: f32[1,96], index: 5, kind: input, shape index: {}]
  %s6 = inlined_call_operand.vmem [shape: f32[32,8], index: 6, kind: input, shape index: {}]
  %s7 = inlined_call_operand.vmem [shape: f32[1,8], index: 7, kind: input, shape index: {}]
  %s8 = inlined_call_operand.vmem [shape: f32[64,128], index: 8, kind: output, shape index: {0}]
  %s9 = inlined_call_operand.hbm [shape: s32[2,128], index: 9, kind: output, shape index: {1}]
  %s10 = inlined_call_operand.hbm [shape: f32[64,128], index: 10, kind: output, shape index: {2}]
  %11 = xla_tuple %s8, %s9, %s10
  %s12 = sld [smem:[#allocation0]]
  $region58: #{x_bert_vqvae_forward.1} parent=0
    _
  %s14 = ssub.s32 1, %s12
  %s15 = scalar_select 0, %s14, %s12
  $region1: #{x_bert_vqvae_forward.1} parent=0
    #allocation2 [shape = 'u8[1024]{0}', space=vmem, size = 0x400, scoped, tag = 'output window, operand 1, single buffered']
    #allocation3 [shape = 's32[1]{0}', space=sflag, size = 0x4, scoped, tag = 'scoped memory for x_bert_vqvae_forward.1']
    #allocation4 [shape = 'u8[32768]{0}', space=vmem, size = 0x8000, scoped, tag = 'output window, operand 2, single buffered']
    #allocation5 [shape = 's32[1]{0}', space=sflag, size = 0x4, scoped, tag = 'scoped memory for x_bert_vqvae_forward.1']
    %16 = vsyncpa [#allocation3], 0
    %17 = vsyncpa [#allocation5], 0
    // Predicated region
    $region2: #{x_bert_vqvae_forward.1} parent=1 // pred_check
      _
    $region3: #{x_bert_vqvae_forward.1} parent=1 // pred_check_branch
      %19 = sbr.rel (0) target = $region5
    $region4: #{x_bert_vqvae_forward.1} parent=1 // pred_region
      _
    $region5: #{x_bert_vqvae_forward.1} parent=1 // pred_fallthru
      _
    // Predicated region
    $region6: #{x_bert_vqvae_forward.1} parent=1 // pred_check
      _
    $region7: #{x_bert_vqvae_forward.1} parent=1 // pred_check_branch
      %21 = sbr.rel (0) target = $region9
    $region8: #{x_bert_vqvae_forward.1} parent=1 // pred_region
      _
    $region9: #{x_bert_vqvae_forward.1} parent=1 // pred_fallthru
      _
    // Predicated region
    $region10: #{x_bert_vqvae_forward.1} parent=1 // pred_check
      _
    $region11: #{x_bert_vqvae_forward.1} parent=1 // pred_check_branch
      %23 = sbr.rel (0) target = $region13
    $region12: #{x_bert_vqvae_forward.1} parent=1 // pred_region
      _
    $region13: #{x_bert_vqvae_forward.1} parent=1 // pred_fallthru
      _
    // Predicated region
    $region14: #{x_bert_vqvae_forward.1} parent=1 // pred_check
      _
    $region15: #{x_bert_vqvae_forward.1} parent=1 // pred_check_branch
      %25 = sbr.rel (0) target = $region17
    $region16: #{x_bert_vqvae_forward.1} parent=1 // pred_region
      _
    $region17: #{x_bert_vqvae_forward.1} parent=1 // pred_fallthru
      _
    // Predicated region
    $region18: #{x_bert_vqvae_forward.1} parent=1 // pred_check
      _
    $region19: #{x_bert_vqvae_forward.1} parent=1 // pred_check_branch
      %27 = sbr.rel (0) target = $region21
    $region20: #{x_bert_vqvae_forward.1} parent=1 // pred_region
      _
    $region21: #{x_bert_vqvae_forward.1} parent=1 // pred_fallthru
      _
    // Predicated region
    $region22: #{x_bert_vqvae_forward.1} parent=1 // pred_check
      _
    $region23: #{x_bert_vqvae_forward.1} parent=1 // pred_check_branch
      %29 = sbr.rel (0) target = $region25
    $region24: #{x_bert_vqvae_forward.1} parent=1 // pred_region
      _
    $region25: #{x_bert_vqvae_forward.1} parent=1 // pred_fallthru
      _
    // Predicated region
    $region26: #{x_bert_vqvae_forward.1} parent=1 // pred_check
      _
    $region27: #{x_bert_vqvae_forward.1} parent=1 // pred_check_branch
      %31 = sbr.rel (0) target = $region29
    $region28: #{x_bert_vqvae_forward.1} parent=1 // pred_region
      _
    $region29: #{x_bert_vqvae_forward.1} parent=1 // pred_fallthru
      _
    // Predicated region
    $region30: #{x_bert_vqvae_forward.1} parent=1 // pred_check
      _
    $region31: #{x_bert_vqvae_forward.1} parent=1 // pred_check_branch
      %33 = sbr.rel (0) target = $region33
    $region32: #{x_bert_vqvae_forward.1} parent=1 // pred_region
      _
    $region33: #{x_bert_vqvae_forward.1} parent=1 // pred_fallthru
      _
    %v34 = vld [vmem:[%s0] sm:$0xff]
    %v35 = vld [vmem:[%s0 + $0x8] sm:$0xff]
    %v36 = vld [vmem:[%s0 + $0x10] sm:$0xff]
    %v37 = vld [vmem:[%s0 + $0x18] sm:$0xff]
    %s38 = scalar_lea.vmem %s0, 32
    %v39 = vld [vmem:[%s38] sm:$0xff]
    %v40 = vld [vmem:[%s38 + $0x8] sm:$0xff]
    %v41 = vld [vmem:[%s38 + $0x10] sm:$0xff]
    %v42 = vld [vmem:[%s38 + $0x18] sm:$0xff]
    %v43 = vld [vmem:[%s1] sm:$0xff]
    %v44 = vld [vmem:[%s1 + $0x8] sm:$0xff]
    %v45 = vld [vmem:[%s1 + $0x10] sm:$0xff]
    %v46 = vld [vmem:[%s1 + $0x18] sm:$0xff]
    %v47 = vld [vmem:[%s1 + $0x20] sm:$0xff]
    %v48 = vld [vmem:[%s1 + $0x28] sm:$0xff]
    %v49 = vld [vmem:[%s1 + $0x30] sm:$0xff]
    %v50 = vld [vmem:[%s1 + $0x38] sm:$0xff]
    %v51 = vld [vmem:[%s3] sm:$0xff]
    %v52 = vld [vmem:[%s3 + $0x8] sm:$0xff]
    %v53 = vld [vmem:[%s3 + $0x10] sm:$0xff]
    %v54 = vld [vmem:[%s3 + $0x18] sm:$0xff]
    %v55 = vld [vmem:[%s3 + $0x20] sm:$0xff]
    %v56 = vld [vmem:[%s3 + $0x28] sm:$0xff]
    %v57 = vld [vmem:[%s3 + $0x30] sm:$0xff]
    %v58 = vld [vmem:[%s3 + $0x38] sm:$0xff]
    %60 = vset.pattern.permute.xlu0 0
    %61 = vperm.xlu0 %60, %v51
    %v62 = vpop.permute.xlu0 %61
    %65 = vset.pattern.permute.xlu0 0
    %66 = vperm.xlu0 %65, %v52
    %v67 = vpop.permute.xlu0 %66
    %70 = vset.pattern.permute.xlu0 0
    %71 = vperm.xlu0 %70, %v53
    %v72 = vpop.permute.xlu0 %71
    %75 = vset.pattern.permute.xlu0 0
    %76 = vperm.xlu0 %75, %v54
    %v77 = vpop.permute.xlu0 %76
    %80 = vset.pattern.permute.xlu0 0
    %81 = vperm.xlu0 %80, %v55
    %v82 = vpop.permute.xlu0 %81
    %85 = vset.pattern.permute.xlu0 0
    %86 = vperm.xlu0 %85, %v56
    %v87 = vpop.permute.xlu0 %86
    %90 = vset.pattern.permute.xlu0 0
    %91 = vperm.xlu0 %90, %v57
    %v92 = vpop.permute.xlu0 %91
    %95 = vset.pattern.permute.xlu0 0
    %96 = vperm.xlu0 %95, %v58
    %v97 = vpop.permute.xlu0 %96
    %vm99 = vcmask 261120
    %v101 = vsel %vm99, %v43, 0
    %v104 = vsel %vm99, %v44, 0
    %v107 = vsel %vm99, %v45, 0
    %v110 = vsel %vm99, %v46, 0
    %v113 = vsel %vm99, %v47, 0
    %v116 = vsel %vm99, %v48, 0
    %v119 = vsel %vm99, %v49, 0
    %v122 = vsel %vm99, %v50, 0
    %124 = vmatpush.msra.mxu0 0.0
    %125 = vmatpush.msra.mxu0 0.0
    %126 = vmatpush.msra.mxu0 0.0
    %127 = vmatpush.msra.mxu0 0.0
    %128 = vmatpush.msra.mxu0 0.0
    %129 = vmatpush.msra.mxu0 0.0
    %130 = vmatpush.msra.mxu0 0.0
    %131 = vmatpush.msra.mxu0 0.0
    %132 = vmatpush.msra.mxu0 0.0
    %133 = vmatpush.msra.mxu0 0.0
    %134 = vmatpush.msra.mxu0 0.0
    %135 = vmatpush.msra.mxu0 0.0
    %136 = vmatpush.msra.mxu0 %v37
    %137 = vmatpush.msra.mxu0 %v36
    %138 = vmatpush.msra.mxu0 %v35
    %139 = vmatpush.msra.mxu0 %v34
    %140 = vmatmul.f32.gmra.mxu0 %v101
    %v141 = vpop.f32.mrf.mxu0
    %v142 = vadd.f32 %v62, %v141
    %143 = vmatmul.f32.gmra.mxu0 %v104
    %v144 = vpop.f32.mrf.mxu0
    %v145 = vadd.f32 %v67, %v144
    %146 = vmatmul.f32.gmra.mxu0 %v107
    %v147 = vpop.f32.mrf.mxu0
    %v148 = vadd.f32 %v72, %v147
    %149 = vmatmul.f32.gmra.mxu0 %v110
    %v150 = vpop.f32.mrf.mxu0
    %v151 = vadd.f32 %v77, %v150
    %152 = vmatmul.f32.gmra.mxu0 %v113
    %v153 = vpop.f32.mrf.mxu0
    %v154 = vadd.f32 %v82, %v153
    %155 = vmatmul.f32.gmra.mxu0 %v116
    %v156 = vpop.f32.mrf.mxu0
    %v157 = vadd.f32 %v87, %v156
    %158 = vmatmul.f32.gmra.mxu0 %v119
    %v159 = vpop.f32.mrf.mxu0
    %v160 = vadd.f32 %v92, %v159
    %161 = vmatmul.f32.gmra.mxu0 %v122
    %v162 = vpop.f32.mrf.mxu0
    %v163 = vadd.f32 %v97, %v162
    %164 = vdwg.mxu0
    %165 = vmatpush.msra.mxu0 0.0
    %166 = vmatpush.msra.mxu0 0.0
    %167 = vmatpush.msra.mxu0 0.0
    %168 = vmatpush.msra.mxu0 0.0
    %169 = vmatpush.msra.mxu0 0.0
    %170 = vmatpush.msra.mxu0 0.0
    %171 = vmatpush.msra.mxu0 0.0
    %172 = vmatpush.msra.mxu0 0.0
    %173 = vmatpush.msra.mxu0 0.0
    %174 = vmatpush.msra.mxu0 0.0
    %175 = vmatpush.msra.mxu0 0.0
    %176 = vmatpush.msra.mxu0 0.0
    %177 = vmatpush.msra.mxu0 %v42
    %178 = vmatpush.msra.mxu0 %v41
    %179 = vmatpush.msra.mxu0 %v40
    %180 = vmatpush.msra.mxu0 %v39
    %181 = vmatmul.f32.gmra.mxu0 %v101
    %v182 = vpop.f32.mrf.mxu0
    %v183 = vadd.f32 %v62, %v182
    %184 = vmatmul.f32.gmra.mxu0 %v104
    %v185 = vpop.f32.mrf.mxu0
    %v186 = vadd.f32 %v67, %v185
    %187 = vmatmul.f32.gmra.mxu0 %v107
    %v188 = vpop.f32.mrf.mxu0
    %v189 = vadd.f32 %v72, %v188
    %190 = vmatmul.f32.gmra.mxu0 %v110
    %v191 = vpop.f32.mrf.mxu0
    %v192 = vadd.f32 %v77, %v191
    %193 = vmatmul.f32.gmra.mxu0 %v113
    %v194 = vpop.f32.mrf.mxu0
    %v195 = vadd.f32 %v82, %v194
    %196 = vmatmul.f32.gmra.mxu0 %v116
    %v197 = vpop.f32.mrf.mxu0
    %v198 = vadd.f32 %v87, %v197
    %199 = vmatmul.f32.gmra.mxu0 %v119
    %v200 = vpop.f32.mrf.mxu0
    %v201 = vadd.f32 %v92, %v200
    %202 = vmatmul.f32.gmra.mxu0 %v122
    %v203 = vpop.f32.mrf.mxu0
    %v204 = vadd.f32 %v97, %v203
    %205 = vdwg.mxu0
    %v206 = vmax.f32 %v142, %v148
    %v207 = vmax.f32 %v145, %v151
    %v208 = vmax.f32 %v206, %v154
    %v209 = vmax.f32 %v207, %v157
    %v210 = vmax.f32 %v208, %v160
    %v211 = vmax.f32 %v209, %v163
    %v212 = vmax.f32 %v210, %v211
    %v213 = vrot.slane %v212, 4
    %v214 = vmax.f32 %v212, %v213
    %v215 = vrot.slane %v214, 2
    %v216 = vmax.f32 %v214, %v215
    %v217 = vrot.slane %v216, 1
    %v218 = vmax.f32 %v216, %v217
    %v219 = vmax.f32 %v183, %v189
    %v220 = vmax.f32 %v186, %v192
    %v221 = vmax.f32 %v219, %v195
    %v222 = vmax.f32 %v220, %v198
    %v223 = vmax.f32 %v221, %v201
    %v224 = vmax.f32 %v222, %v204
    %v225 = vmax.f32 %v223, %v224
    %v226 = vrot.slane %v225, 4
    %v227 = vmax.f32 %v225, %v226
    %v228 = vrot.slane %v227, 2
    %v229 = vmax.f32 %v227, %v228
    %v230 = vrot.slane %v229, 1
    %v231 = vmax.f32 %v229, %v230
    %v232 = vlaneseq
    %v233 = vshrl.u32 %v232, 7
    %v234 = vadd.s32 %v233, 8
    %v235 = vadd.s32 %v233, 16
    %v236 = vadd.s32 %v233, 24
    %v237 = vadd.s32 %v233, 32
    %v238 = vadd.s32 %v233, 40
    %v239 = vadd.s32 %v233, 48
    %v240 = vadd.s32 %v233, 56
    %vm241 = vcmp.eq.f32.partialorder %v142, %v218
    %vm242 = vcmp.eq.f32.partialorder %v183, %v231
    %vm243 = vcmp.eq.f32.partialorder %v145, %v218
    %vm244 = vcmp.eq.f32.partialorder %v186, %v231
    %vm245 = vcmp.eq.f32.partialorder %v148, %v218
    %vm246 = vcmp.eq.f32.partialorder %v189, %v231
    %vm247 = vcmp.eq.f32.partialorder %v151, %v218
    %vm248 = vcmp.eq.f32.partialorder %v192, %v231
    %vm249 = vcmp.eq.f32.partialorder %v154, %v218
    %vm250 = vcmp.eq.f32.partialorder %v195, %v231
    %vm251 = vcmp.eq.f32.partialorder %v157, %v218
    %vm252 = vcmp.eq.f32.partialorder %v198, %v231
    %vm253 = vcmp.eq.f32.partialorder %v160, %v218
    %vm254 = vcmp.eq.f32.partialorder %v201, %v231
    %vm255 = vcmp.eq.f32.partialorder %v163, %v218
    %vm256 = vcmp.eq.f32.partialorder %v204, %v231
    %v257 = vsel %vm241, %v233, 64
    %v258 = vsel %vm242, %v233, 64
    %v259 = vsel %vm243, %v234, 64
    %v260 = vsel %vm244, %v234, 64
    %v261 = vsel %vm245, %v235, 64
    %v262 = vsel %vm246, %v235, 64
    %v263 = vsel %vm247, %v236, 64
    %v264 = vsel %vm248, %v236, 64
    %v265 = vsel %vm249, %v237, 64
    %v266 = vsel %vm250, %v237, 64
    %v267 = vsel %vm251, %v238, 64
    %v268 = vsel %vm252, %v238, 64
    %v269 = vsel %vm253, %v239, 64
    %v270 = vsel %vm254, %v239, 64
    %v271 = vsel %vm255, %v240, 64
    %v272 = vsel %vm256, %v240, 64
    %vm273 = vcmp.lt.s32.totalorder %v257, %v261
    %v274 = vsel %vm273, %v257, %v261
    %vm275 = vcmp.lt.s32.totalorder %v259, %v263
    %v276 = vsel %vm275, %v259, %v263
    %vm277 = vcmp.lt.s32.totalorder %v274, %v265
    %v278 = vsel %vm277, %v274, %v265
    %vm279 = vcmp.lt.s32.totalorder %v276, %v267
    %v280 = vsel %vm279, %v276, %v267
    %vm281 = vcmp.lt.s32.totalorder %v278, %v269
    %v282 = vsel %vm281, %v278, %v269
    %vm283 = vcmp.lt.s32.totalorder %v280, %v271
    %v284 = vsel %vm283, %v280, %v271
    %vm285 = vcmp.lt.s32.totalorder %v282, %v284
    %v286 = vsel %vm285, %v282, %v284
    %v287 = vrot.slane %v286, 4
    %vm288 = vcmp.lt.s32.totalorder %v286, %v287
    %v289 = vsel %vm288, %v286, %v287
    %v290 = vrot.slane %v289, 2
    %vm291 = vcmp.lt.s32.totalorder %v289, %v290
    %v292 = vsel %vm291, %v289, %v290
    %v293 = vrot.slane %v292, 1
    %vm294 = vcmp.lt.s32.totalorder %v292, %v293
    %v295 = vsel %vm294, %v292, %v293
    %vm296 = vcmp.lt.s32.totalorder %v258, %v262
    %v297 = vsel %vm296, %v258, %v262
    %vm298 = vcmp.lt.s32.totalorder %v260, %v264
    %v299 = vsel %vm298, %v260, %v264
    %vm300 = vcmp.lt.s32.totalorder %v297, %v266
    %v301 = vsel %vm300, %v297, %v266
    %vm302 = vcmp.lt.s32.totalorder %v299, %v268
    %v303 = vsel %vm302, %v299, %v268
    %vm304 = vcmp.lt.s32.totalorder %v301, %v270
    %v305 = vsel %vm304, %v301, %v270
    %vm306 = vcmp.lt.s32.totalorder %v303, %v272
    %v307 = vsel %vm306, %v303, %v272
    %vm308 = vcmp.lt.s32.totalorder %v305, %v307
    %v309 = vsel %vm308, %v305, %v307
    %v310 = vrot.slane %v309, 4
    %vm311 = vcmp.lt.s32.totalorder %v309, %v310
    %v312 = vsel %vm311, %v309, %v310
    %v313 = vrot.slane %v312, 2
    %vm314 = vcmp.lt.s32.totalorder %v312, %v313
    %v315 = vsel %vm314, %v312, %v313
    %v316 = vrot.slane %v315, 1
    %vm317 = vcmp.lt.s32.totalorder %v315, %v316
    %v318 = vsel %vm317, %v315, %v316
    %vm319 = vcmp.eq.s32.totalorder %v233, %v295
    %vm320 = vcmp.eq.s32.totalorder %v233, %v318
    %vm321 = vcmp.eq.s32.totalorder %v234, %v295
    %vm322 = vcmp.eq.s32.totalorder %v234, %v318
    %vm323 = vcmp.eq.s32.totalorder %v235, %v295
    %vm324 = vcmp.eq.s32.totalorder %v235, %v318
    %vm325 = vcmp.eq.s32.totalorder %v236, %v295
    %vm326 = vcmp.eq.s32.totalorder %v236, %v318
    %vm327 = vcmp.eq.s32.totalorder %v237, %v295
    %vm328 = vcmp.eq.s32.totalorder %v237, %v318
    %vm329 = vcmp.eq.s32.totalorder %v238, %v295
    %vm330 = vcmp.eq.s32.totalorder %v238, %v318
    %vm331 = vcmp.eq.s32.totalorder %v239, %v295
    %vm332 = vcmp.eq.s32.totalorder %v239, %v318
    %vm333 = vcmp.eq.s32.totalorder %v240, %v295
    %vm334 = vcmp.eq.s32.totalorder %v240, %v318
    %v335 = vsel %vm319, 1, 0
    %v336 = vsel %vm320, 1, 0
    %v337 = vsel %vm321, 1, 0
    %v338 = vsel %vm322, 1, 0
    %v339 = vsel %vm323, 1, 0
    %v340 = vsel %vm324, 1, 0
    %v341 = vsel %vm325, 1, 0
    %v342 = vsel %vm326, 1, 0
    %v343 = vsel %vm327, 1, 0
    %v344 = vsel %vm328, 1, 0
    %v345 = vsel %vm329, 1, 0
    %v346 = vsel %vm330, 1, 0
    %v347 = vsel %vm331, 1, 0
    %v348 = vsel %vm332, 1, 0
    %v349 = vsel %vm333, 1, 0
    %v350 = vsel %vm334, 1, 0
    %v351 = vcvt.s32.f32 %v335
    %v352 = vcvt.s32.f32 %v336
    %v353 = vcvt.s32.f32 %v337
    %v354 = vcvt.s32.f32 %v338
    %v355 = vcvt.s32.f32 %v339
    %v356 = vcvt.s32.f32 %v340
    %v357 = vcvt.s32.f32 %v341
    %v358 = vcvt.s32.f32 %v342
    %v359 = vcvt.s32.f32 %v343
    %v360 = vcvt.s32.f32 %v344
    %v361 = vcvt.s32.f32 %v345
    %v362 = vcvt.s32.f32 %v346
    %v363 = vcvt.s32.f32 %v347
    %v364 = vcvt.s32.f32 %v348
    %v365 = vcvt.s32.f32 %v349
    %v366 = vcvt.s32.f32 %v350
    %v367 = vld [vmem:[%s2] sm:$0xff]
    %v368 = vld [vmem:[%s2 + $0x8] sm:$0xff]
    %v369 = vld [vmem:[%s2 + $0x10] sm:$0xff]
    %v370 = vld [vmem:[%s2 + $0x18] sm:$0xff]
    %vm371 = vcmask 523264
    %v373 = vsel %vm371, %v367, 0
    %v376 = vsel %vm371, %v368, 0
    %v379 = vsel %vm371, %v369, 0
    %v382 = vsel %vm371, %v370, 0
    %384 = vmatpush.msra.mxu0 0.0
    %385 = vmatpush.msra.mxu0 0.0
    %386 = vmatpush.msra.mxu0 0.0
    %387 = vmatpush.msra.mxu0 0.0
    %388 = vmatpush.msra.mxu0 0.0
    %389 = vmatpush.msra.mxu0 0.0
    %390 = vmatpush.msra.mxu0 0.0
    %391 = vmatpush.msra.mxu0 0.0
    %392 = vmatpush.msra.mxu0 %v365
    %393 = vmatpush.msra.mxu0 %v363
    %394 = vmatpush.msra.mxu0 %v361
    %395 = vmatpush.msra.mxu0 %v359
    %396 = vmatpush.msra.mxu0 %v357
    %397 = vmatpush.msra.mxu0 %v355
    %398 = vmatpush.msra.mxu0 %v353
    %399 = vmatpush.msra.mxu0 %v351
    %400 = vmatmul.f32.gmra.mxu0 %v373
    %v401 = vpop.f32.mrf.mxu0
    %v402 = vadd.f32 0.0, %v401
    %403 = vmatmul.f32.gmra.mxu0 %v376
    %v404 = vpop.f32.mrf.mxu0
    %v405 = vadd.f32 0.0, %v404
    %406 = vmatmul.f32.gmra.mxu0 %v379
    %v407 = vpop.f32.mrf.mxu0
    %v408 = vadd.f32 0.0, %v407
    %409 = vmatmul.f32.gmra.mxu0 %v382
    %v410 = vpop.f32.mrf.mxu0
    %v411 = vadd.f32 0.0, %v410
    %412 = vdwg.mxu0
    %413 = vmatpush.msra.mxu0 0.0
    %414 = vmatpush.msra.mxu0 0.0
    %415 = vmatpush.msra.mxu0 0.0
    %416 = vmatpush.msra.mxu0 0.0
    %417 = vmatpush.msra.mxu0 0.0
    %418 = vmatpush.msra.mxu0 0.0
    %419 = vmatpush.msra.mxu0 0.0
    %420 = vmatpush.msra.mxu0 0.0
    %421 = vmatpush.msra.mxu0 %v366
    %422 = vmatpush.msra.mxu0 %v364
    %423 = vmatpush.msra.mxu0 %v362
    %424 = vmatpush.msra.mxu0 %v360
    %425 = vmatpush.msra.mxu0 %v358
    %426 = vmatpush.msra.mxu0 %v356
    %427 = vmatpush.msra.mxu0 %v354
    %428 = vmatpush.msra.mxu0 %v352
    %429 = vmatmul.f32.gmra.mxu0 %v373
    %v430 = vpop.f32.mrf.mxu0
    %v431 = vadd.f32 0.0, %v430
    %432 = vmatmul.f32.gmra.mxu0 %v376
    %v433 = vpop.f32.mrf.mxu0
    %v434 = vadd.f32 0.0, %v433
    %435 = vmatmul.f32.gmra.mxu0 %v379
    %v436 = vpop.f32.mrf.mxu0
    %v437 = vadd.f32 0.0, %v436
    %438 = vmatmul.f32.gmra.mxu0 %v382
    %v439 = vpop.f32.mrf.mxu0
    %v440 = vadd.f32 0.0, %v439
    %441 = vdwg.mxu0
    %v442 = vlaneseq
    %v443 = vand.u32 %v442, 127
    %vm444 = vcmp.lt.s32.totalorder %v443, 72
    %v445 = vsel %vm444, %v402, 0.0
    %v446 = vsel %vm444, %v405, 0.0
    %v447 = vsel %vm444, %v408, 0.0
    %v448 = vsel %vm444, %v411, 0.0
    %v449 = vsel %vm444, %v431, 0.0
    %v450 = vsel %vm444, %v434, 0.0
    %v451 = vsel %vm444, %v437, 0.0
    %v452 = vsel %vm444, %v440, 0.0
    %453 = vst [vmem:[#allocation4] sm:$0xff] %v445
    %454 = vst [vmem:[#allocation4 + $0x8] sm:$0xff] %v446
    %455 = vst [vmem:[#allocation4 + $0x10] sm:$0xff] %v447
    %456 = vst [vmem:[#allocation4 + $0x18] sm:$0xff] %v448
    %457 = vst [vmem:[#allocation4 + $0x20] sm:$0xff] %v449
    %458 = vst [vmem:[#allocation4 + $0x28] sm:$0xff] %v450
    %459 = vst [vmem:[#allocation4 + $0x30] sm:$0xff] %v451
    %460 = vst [vmem:[#allocation4 + $0x38] sm:$0xff] %v452
    %vm461 = vcmask 1040384
    %v462 = vsel %vm461, %v295, %v318
    %463 = vst [vmem:[#allocation2] sm:$0x3] %v462
    %v464 = vsub.f32 %v445, %v34
    %v465 = vsub.f32 %v446, %v35
    %v466 = vsub.f32 %v447, %v36
    %v467 = vsub.f32 %v448, %v37
    %v468 = vsub.f32 %v449, %v39
    %v469 = vsub.f32 %v450, %v40
    %v470 = vsub.f32 %v451, %v41
    %v471 = vsub.f32 %v452, %v42
    %v472 = vmul.f32 %v464, %v464
    %v473 = vmul.f32 %v465, %v465
    %v474 = vmul.f32 %v466, %v466
    %v475 = vmul.f32 %v467, %v467
    %v476 = vmul.f32 %v468, %v468
    %v477 = vmul.f32 %v469, %v469
    %v478 = vmul.f32 %v470, %v470
    %v479 = vmul.f32 %v471, %v471
    %v480 = vadd.f32 %v472, %v473
    %v481 = vadd.f32 %v480, %v474
    %v482 = vadd.f32 %v481, %v475
    %v483 = vadd.f32 %v482, %v476
    %v484 = vadd.f32 %v483, %v477
    %v485 = vadd.f32 %v484, %v478
    %v486 = vadd.f32 %v485, %v479
    %487 = vadd.xlane.f32.xlu0 %v486
    %v488 = vpop.xlane.xlu0 %487
    %v489 = vrot.slane %v488, 4
    %v490 = vadd.f32 %v488, %v489
    %v491 = vrot.slane %v490, 2
    %v492 = vadd.f32 %v490, %v491
    %v493 = vrot.slane %v492, 1
    %v494 = vadd.f32 %v492, %v493
    %s495 = vtos %v494
    %v496 = vld [vmem:[%s4] sm:$0xff]
    %v497 = vld [vmem:[%s4 + $0x8] sm:$0xff]
    %v498 = vld [vmem:[%s4 + $0x10] sm:$0xff]
    %v499 = vld [vmem:[%s4 + $0x18] sm:$0xff]
    %v500 = vld [vmem:[%s4 + $0x20] sm:$0xff]
    %v501 = vld [vmem:[%s4 + $0x28] sm:$0xff]
    %v502 = vld [vmem:[%s4 + $0x30] sm:$0xff]
    %v503 = vld [vmem:[%s4 + $0x38] sm:$0xff]
    %v504 = vld [vmem:[%s4 + $0x40] sm:$0xff]
    %v505 = vld [vmem:[%s4 + $0x48] sm:$0xff]
    %v506 = vld [vmem:[%s4 + $0x50] sm:$0xff]
    %v507 = vld [vmem:[%s4 + $0x58] sm:$0xff]
    %v508 = vld [vmem:[%s4 + $0x60] sm:$0xff]
    %v509 = vld [vmem:[%s4 + $0x68] sm:$0xff]
    %v510 = vld [vmem:[%s4 + $0x70] sm:$0xff]
    %v511 = vld [vmem:[%s4 + $0x78] sm:$0xff]
    %v512 = vld [vmem:[%s5] sm:$0x1]
    %v514 = vperm.slane %v512, 0
    %516 = vmatpush.msra.mxu0 %v511
    %517 = vmatpush.msra.mxu0 %v510
    %518 = vmatpush.msra.mxu0 %v509
    %519 = vmatpush.msra.mxu0 %v508
    %520 = vmatpush.msra.mxu0 %v507
    %521 = vmatpush.msra.mxu0 %v506
    %522 = vmatpush.msra.mxu0 %v505
    %523 = vmatpush.msra.mxu0 %v504
    %524 = vmatpush.msra.mxu0 %v503
    %525 = vmatpush.msra.mxu0 %v502
    %526 = vmatpush.msra.mxu0 %v501
    %527 = vmatpush.msra.mxu0 %v500
    %528 = vmatpush.msra.mxu0 %v499
    %529 = vmatpush.msra.mxu0 %v498
    %530 = vmatpush.msra.mxu0 %v497
    %531 = vmatpush.msra.mxu0 %v496
    %532 = vmatmul.f32.gmra.mxu0 %v445
    %v533 = vpop.f32.mrf.mxu0
    %v534 = vadd.f32 %v514, %v533
    %535 = vmatmul.f32.gmra.mxu0 %v446
    %v536 = vpop.f32.mrf.mxu0
    %v537 = vadd.f32 %v514, %v536
    %538 = vmatmul.f32.gmra.mxu0 %v447
    %v539 = vpop.f32.mrf.mxu0
    %v540 = vadd.f32 %v514, %v539
    %541 = vmatmul.f32.gmra.mxu0 %v448
    %v542 = vpop.f32.mrf.mxu0
    %v543 = vadd.f32 %v514, %v542
    %544 = vmatmul.f32.gmra.mxu0 %v449
    %v545 = vpop.f32.mrf.mxu0
    %v546 = vadd.f32 %v514, %v545
    %547 = vmatmul.f32.gmra.mxu0 %v450
    %v548 = vpop.f32.mrf.mxu0
    %v549 = vadd.f32 %v514, %v548
    %550 = vmatmul.f32.gmra.mxu0 %v451
    %v551 = vpop.f32.mrf.mxu0
    %v552 = vadd.f32 %v514, %v551
    %553 = vmatmul.f32.gmra.mxu0 %v452
    %v554 = vpop.f32.mrf.mxu0
    %v555 = vadd.f32 %v514, %v554
    %556 = vdwg.mxu0
    %v557 = vmax.f32 %v534, 0.0
    %v558 = vmax.f32 %v537, 0.0
    %v559 = vmax.f32 %v540, 0.0
    %v560 = vmax.f32 %v543, 0.0
    %v561 = vmax.f32 %v546, 0.0
    %v562 = vmax.f32 %v549, 0.0
    %v563 = vmax.f32 %v552, 0.0
    %v564 = vmax.f32 %v555, 0.0
    %v565 = vld [vmem:[%s6] sm:$0xff]
    %v566 = vld [vmem:[%s6 + $0x8] sm:$0xff]
    %v567 = vld [vmem:[%s6 + $0x10] sm:$0xff]
    %v568 = vld [vmem:[%s6 + $0x18] sm:$0xff]
    %v569 = vld [vmem:[%s7] sm:$0x1]
    %v571 = vperm.slane %v569, 0
    %v574 = vsel %vm99, %v557, 0
    %v577 = vsel %vm99, %v558, 0
    %v580 = vsel %vm99, %v559, 0
    %v583 = vsel %vm99, %v560, 0
    %v586 = vsel %vm99, %v561, 0
    %v589 = vsel %vm99, %v562, 0
    %v592 = vsel %vm99, %v563, 0
    %v595 = vsel %vm99, %v564, 0
    %597 = vmatpush.msra.mxu0 0.0
    %598 = vmatpush.msra.mxu0 0.0
    %599 = vmatpush.msra.mxu0 0.0
    %600 = vmatpush.msra.mxu0 0.0
    %601 = vmatpush.msra.mxu0 0.0
    %602 = vmatpush.msra.mxu0 0.0
    %603 = vmatpush.msra.mxu0 0.0
    %604 = vmatpush.msra.mxu0 0.0
    %605 = vmatpush.msra.mxu0 0.0
    %606 = vmatpush.msra.mxu0 0.0
    %607 = vmatpush.msra.mxu0 0.0
    %608 = vmatpush.msra.mxu0 0.0
    %609 = vmatpush.msra.mxu0 %v568
    %610 = vmatpush.msra.mxu0 %v567
    %611 = vmatpush.msra.mxu0 %v566
    %612 = vmatpush.msra.mxu0 %v565
    %613 = vmatmul.f32.gmra.mxu0 %v574
    %v614 = vpop.f32.mrf.mxu0
    %v615 = vadd.f32 %v571, %v614
    %616 = vmatmul.f32.gmra.mxu0 %v577
    %v617 = vpop.f32.mrf.mxu0
    %v618 = vadd.f32 %v571, %v617
    %619 = vmatmul.f32.gmra.mxu0 %v580
    %v620 = vpop.f32.mrf.mxu0
    %v621 = vadd.f32 %v571, %v620
    %622 = vmatmul.f32.gmra.mxu0 %v583
    %v623 = vpop.f32.mrf.mxu0
    %v624 = vadd.f32 %v571, %v623
    %625 = vmatmul.f32.gmra.mxu0 %v586
    %v626 = vpop.f32.mrf.mxu0
    %v627 = vadd.f32 %v571, %v626
    %628 = vmatmul.f32.gmra.mxu0 %v589
    %v629 = vpop.f32.mrf.mxu0
    %v630 = vadd.f32 %v571, %v629
    %631 = vmatmul.f32.gmra.mxu0 %v592
    %v632 = vpop.f32.mrf.mxu0
    %v633 = vadd.f32 %v571, %v632
    %634 = vmatmul.f32.gmra.mxu0 %v595
    %v635 = vpop.f32.mrf.mxu0
    %v636 = vadd.f32 %v571, %v635
    %637 = vdwg.mxu0
    %vm638 = vcmp.eq.s32.totalorder %v233, 0
    %vm639 = vcmp.eq.s32.totalorder %v234, 0
    %vm640 = vcmp.eq.s32.totalorder %v235, 0
    %vm641 = vcmp.eq.s32.totalorder %v236, 0
    %vm642 = vcmp.eq.s32.totalorder %v237, 0
    %vm643 = vcmp.eq.s32.totalorder %v238, 0
    %vm644 = vcmp.eq.s32.totalorder %v239, 0
    %vm645 = vcmp.eq.s32.totalorder %v240, 0
    %vm646 = vcmp.eq.s32.totalorder %v443, 0
    %vm647 = vmand %vm638, %vm646
    %vm648 = vmand %vm639, %vm646
    %vm649 = vmand %vm640, %vm646
    %vm650 = vmand %vm641, %vm646
    %vm651 = vmand %vm642, %vm646
    %vm652 = vmand %vm643, %vm646
    %vm653 = vmand %vm644, %vm646
    %vm654 = vmand %vm645, %vm646
    %v655 = vstv %s495
    %v656 = vsel %vm647, %v655, 0.0
    %v657 = vsel %vm648, %v655, 0.0
    %v658 = vsel %vm649, %v655, 0.0
    %v659 = vsel %vm650, %v655, 0.0
    %v660 = vsel %vm651, %v655, 0.0
    %v661 = vsel %vm652, %v655, 0.0
    %v662 = vsel %vm653, %v655, 0.0
    %v663 = vsel %vm654, %v655, 0.0
    %672 = vrot.lane.b32.xlu0 %v534, 96
    %v673 = vpop.permute.xlu0 %672
    %674 = vrot.lane.b32.xlu0 %v537, 96
    %v675 = vpop.permute.xlu0 %674
    %676 = vrot.lane.b32.xlu0 %v540, 96
    %v677 = vpop.permute.xlu0 %676
    %678 = vrot.lane.b32.xlu0 %v543, 96
    %v679 = vpop.permute.xlu0 %678
    %680 = vrot.lane.b32.xlu0 %v546, 96
    %v681 = vpop.permute.xlu0 %680
    %682 = vrot.lane.b32.xlu0 %v549, 96
    %v683 = vpop.permute.xlu0 %682
    %684 = vrot.lane.b32.xlu0 %v552, 96
    %v685 = vpop.permute.xlu0 %684
    %686 = vrot.lane.b32.xlu0 %v555, 96
    %v687 = vpop.permute.xlu0 %686
    %704 = vrot.lane.b32.xlu0 %v615, 64
    %v705 = vpop.permute.xlu0 %704
    %706 = vrot.lane.b32.xlu0 %v618, 64
    %v707 = vpop.permute.xlu0 %706
    %708 = vrot.lane.b32.xlu0 %v621, 64
    %v709 = vpop.permute.xlu0 %708
    %710 = vrot.lane.b32.xlu0 %v624, 64
    %v711 = vpop.permute.xlu0 %710
    %712 = vrot.lane.b32.xlu0 %v627, 64
    %v713 = vpop.permute.xlu0 %712
    %714 = vrot.lane.b32.xlu0 %v630, 64
    %v715 = vpop.permute.xlu0 %714
    %716 = vrot.lane.b32.xlu0 %v633, 64
    %v717 = vpop.permute.xlu0 %716
    %718 = vrot.lane.b32.xlu0 %v636, 64
    %v719 = vpop.permute.xlu0 %718
    %736 = vrot.lane.b32.xlu0 %v656, 72
    %v737 = vpop.permute.xlu0 %736
    %738 = vrot.lane.b32.xlu0 %v657, 72
    %v739 = vpop.permute.xlu0 %738
    %740 = vrot.lane.b32.xlu0 %v658, 72
    %v741 = vpop.permute.xlu0 %740
    %742 = vrot.lane.b32.xlu0 %v659, 72
    %v743 = vpop.permute.xlu0 %742
    %744 = vrot.lane.b32.xlu0 %v660, 72
    %v745 = vpop.permute.xlu0 %744
    %746 = vrot.lane.b32.xlu0 %v661, 72
    %v747 = vpop.permute.xlu0 %746
    %748 = vrot.lane.b32.xlu0 %v662, 72
    %v749 = vpop.permute.xlu0 %748
    %750 = vrot.lane.b32.xlu0 %v663, 72
    %v751 = vpop.permute.xlu0 %750
    %v760 = vsel %vm371, %v673, %v705
    %v761 = vsel %vm371, %v675, %v707
    %v762 = vsel %vm371, %v677, %v709
    %v763 = vsel %vm371, %v679, %v711
    %v764 = vsel %vm371, %v681, %v713
    %v765 = vsel %vm371, %v683, %v715
    %v766 = vsel %vm371, %v685, %v717
    %v767 = vsel %vm371, %v687, %v719
    %vm768 = vcmask 588800
    %v769 = vsel %vm768, %v760, %v737
    %v770 = vsel %vm768, %v761, %v739
    %v771 = vsel %vm768, %v762, %v741
    %v772 = vsel %vm768, %v763, %v743
    %v773 = vsel %vm768, %v764, %v745
    %v774 = vsel %vm768, %v765, %v747
    %v775 = vsel %vm768, %v766, %v749
    %v776 = vsel %vm768, %v767, %v751
    %777 = vst [vmem:[%s8] sm:$0xff] %v769
    %778 = vst [vmem:[%s8 + $0x8] sm:$0xff] %v770
    %779 = vst [vmem:[%s8 + $0x10] sm:$0xff] %v771
    %780 = vst [vmem:[%s8 + $0x18] sm:$0xff] %v772
    %781 = vst [vmem:[%s8 + $0x20] sm:$0xff] %v773
    %782 = vst [vmem:[%s8 + $0x28] sm:$0xff] %v774
    %783 = vst [vmem:[%s8 + $0x30] sm:$0xff] %v775
    %784 = vst [vmem:[%s8 + $0x38] sm:$0xff] %v776
    // Predicated region
    $region34: #{x_bert_vqvae_forward.1} parent=1 // pred_check
      _
    $region35: #{x_bert_vqvae_forward.1} parent=1 // pred_check_branch
      %786 = sbr.rel (0) target = $region37
    $region36: #{x_bert_vqvae_forward.1} parent=1 // pred_region
      _
    $region37: #{x_bert_vqvae_forward.1} parent=1 // pred_fallthru
      _
    // Predicated region
    $region38: #{x_bert_vqvae_forward.1} parent=1 // pred_check
      _
    $region39: #{x_bert_vqvae_forward.1} parent=1 // pred_check_branch
      %788 = sbr.rel (0) target = $region41
    $region40: #{x_bert_vqvae_forward.1} parent=1 // pred_region
      %790 = vsyncadd [#allocation3], 0
      %s792 = sshll.u32 [#allocation2], 4
      %s793 = int_to_ptr.vmem [resolvable:$true] %s792
      %s794 = sshll.u32 %s9, 4
      %s795 = int_to_ptr.hbm [resolvable:$true] %s794
      %797 = dma.vmem_to_hbm [thread:$0]  %s793, 32, %s795, [#allocation3]
    $region41: #{x_bert_vqvae_forward.1} parent=1 // pred_fallthru
      _
    // Predicated region
    $region42: #{x_bert_vqvae_forward.1} parent=1 // pred_check
      _
    $region43: #{x_bert_vqvae_forward.1} parent=1 // pred_check_branch
      %799 = sbr.rel (0) target = $region45
    $region44: #{x_bert_vqvae_forward.1} parent=1 // pred_region
      %801 = vsyncadd [#allocation5], 0
      %s802 = sshll.u32 [#allocation4], 4
      %s803 = int_to_ptr.vmem [resolvable:$true] %s802
      %s804 = sshll.u32 %s10, 4
      %s805 = int_to_ptr.hbm [resolvable:$true] %s804
      %810 = dma.vmem_to_hbm [thread:$0]  %s803, 1024, %s805, [#allocation5], 128, 128, 8
    $region45: #{x_bert_vqvae_forward.1} parent=1 // pred_fallthru
      _
    // Predicated region
    $region46: #{x_bert_vqvae_forward.1} parent=1 // pred_check
      _
    $region47: #{x_bert_vqvae_forward.1} parent=1 // pred_check_branch
      %812 = sbr.rel (0) target = $region49
    $region48: #{x_bert_vqvae_forward.1} parent=1 // pred_region
      _
    $region49: #{x_bert_vqvae_forward.1} parent=1 // pred_fallthru
      _
    // Predicated region
    $region50: #{x_bert_vqvae_forward.1} parent=1 // pred_check
      _
    $region51: #{x_bert_vqvae_forward.1} parent=1 // pred_check_branch
      %814 = sbr.rel (0) target = $region53
    $region52: #{x_bert_vqvae_forward.1} parent=1 // pred_region
      %816 = dma.done [#allocation3], 32
    $region53: #{x_bert_vqvae_forward.1} parent=1 // pred_fallthru
      _
    // Predicated region
    $region54: #{x_bert_vqvae_forward.1} parent=1 // pred_check
      _
    $region55: #{x_bert_vqvae_forward.1} parent=1 // pred_check_branch
      %818 = sbr.rel (0) target = $region57
    $region56: #{x_bert_vqvae_forward.1} parent=1 // pred_region
      %820 = dma.done [#allocation5], 1024
    $region57: #{x_bert_vqvae_forward.1} parent=1 // pred_fallthru
      _
    %821 = vsyncpa [#allocation3], 1
    %822 = vsyncpa [#allocation5], 1

</llo_original>
